<compile_context>
chip_gen: v7x
topology: tpu7x:2x2x1
jax: 0.10.0
libtpu: 0.0.40
codegen_flags: <defaults>
</compile_context>

<pallas_src>
import math

import jax
import jax.numpy as jnp
from jax.experimental import pallas as pl
from jax.experimental.pallas import tpu as pltpu


def _gelu_exact(x):
    # matches torch.nn.GELU() default (erf form)
    return 0.5 * x * (1.0 + jax.lax.erf(x * (1.0 / math.sqrt(2.0))))


def _round_up(x, m):
    return (x + m - 1) // m * m


# ---------------------------------------------------------------------------
# Kernel 1: grid-invariant action MLP (computed once, tiny: A x hidden)
# ---------------------------------------------------------------------------
def action_mlp_kernel(act_ref, w0_ref, b0_ref, w1_ref, b1_ref, w2_ref, b2_ref, out_ref):
    x = jnp.dot(act_ref[...], w0_ref[...], preferred_element_type=jnp.float32) + b0_ref[...]
    x = _gelu_exact(x)
    x = jnp.dot(x, w1_ref[...], preferred_element_type=jnp.float32) + b1_ref[...]
    x = _gelu_exact(x)
    out_ref[...] = jnp.dot(x, w2_ref[...], preferred_element_type=jnp.float32) + b2_ref[...]


# ---------------------------------------------------------------------------
# Kernel 2: streaming per-B-tile projection + dot with the resident act_emb
# ---------------------------------------------------------------------------
def player_dot_kernel(pe_ref, we_ref, be_ref, act_emb_ref, out_ref):
    # emb = player_emb_tile @ We + be                                    [TILE_B, OUT]
    emb = jnp.dot(pe_ref[...], we_ref[...], preferred_element_type=jnp.float32) + be_ref[...]
    # out[a, b] = sum_d act_emb[a, d] * emb[b, d]   (last-dim/last-dim contraction; the
    # MXU consumes it directly, no explicit transpose in VMEM)           [A, TILE_B]
    out_ref[...] = jax.lax.dot_general(
        act_emb_ref[...], emb,
        dimension_numbers=(((1,), (1,)), ((), ())),
        preferred_element_type=jnp.float32,
    )


def controls_predictor_dot(player_emb, actions, params, *, tile_b=512):
    """Forward pass of ControlsPredictorDot (2-D shared action table, no `flip`).

    player_emb : [B, in_features] f32
    actions    : [A, 8]           f32
    params     : dict we/be/w0/b0/w1/b1/w2/b2, weights already [in, out], biases [1, out]
    returns    : [B, A] f32  (== torch.einsum('ad,bd->ba', act_emb, player_emb))
    """
    B, in_f = player_emb.shape
    A = actions.shape[0]
    out_f = params["we"].shape[1]

    vmem = pl.BlockSpec(memory_space=pltpu.MemorySpace.VMEM)

    # ---- 1) action MLP, computed once (grid-invariant, hoisted off the hot path) ----
    act_emb = pl.pallas_call(
        action_mlp_kernel,
        out_shape=jax.ShapeDtypeStruct((A, out_f), jnp.float32),
        in_specs=[vmem] * 7,
        out_specs=vmem,
    )(actions, params["w0"], params["b0"], params["w1"], params["b1"],
      params["w2"], params["b2"])

    # ---- 2) streaming kernel over the batch dimension -------------------------------
    # TILE_B default (512) gives ~85% of HBM roofline for pipelined f32 tiles while the
    # double-buffered in/out tiles plus resident weights stay far below v7x's 32 MiB
    # scoped VMEM; clamp to the padded batch so small B does a single grid step.
    tile_b = _round_up(max(1, min(tile_b, _round_up(B, 128))), 128)
    b_pad = _round_up(B, tile_b)
    if b_pad != B:
        player_emb = jnp.pad(player_emb, ((0, b_pad - B), (0, 0)))
    grid = (b_pad // tile_b,)

    flops = 2 * b_pad * in_f * out_f + 2 * b_pad * out_f * A
    bytes_accessed = 4 * (b_pad * in_f + A * b_pad + in_f * out_f + out_f + A * out_f)

    out_t = pl.pallas_call(
        player_dot_kernel,
        out_shape=jax.ShapeDtypeStruct((A, b_pad), jnp.float32),
        grid_spec=pltpu.PrefetchScalarGridSpec(
            num_scalar_prefetch=0,
            grid=grid,
            in_specs=[
                # streamed: one B-tile of player_emb per grid step (double-buffered)
                pl.BlockSpec((tile_b, in_f), lambda i: (i, 0)),
                # resident (constant block index -> DMA'd once, not re-fetched per step)
                pl.BlockSpec((in_f, out_f), lambda i: (0, 0)),
                pl.BlockSpec((1, out_f), lambda i: (0, 0)),
                pl.BlockSpec((A, out_f), lambda i: (0, 0)),
            ],
            # lane-dense output: large B axis on the 128-lane dimension -> unmasked vst
            out_specs=pl.BlockSpec((A, tile_b), lambda i: (0, i)),
        ),
        compiler_params=pltpu.CompilerParams(
            dimension_semantics=("parallel",),        # megacore split on v7x
            vmem_limit_bytes=32 * 1024 * 1024,
        ),
        cost_estimate=pl.CostEstimate(
            flops=flops, transcendentals=0, bytes_accessed=bytes_accessed),
    )(player_emb, params["we"], params["be"], act_emb)

    # back to the module's [B, A] layout: slice the padding off first, then a cheap
    # XLA transpose of only the real rows.
    return out_t[:, :B].T


# ---------------------------------------------------------------------------
# Parameter setup + pure-JAX reference
# ---------------------------------------------------------------------------
def _init_linear(key, fan_in, fan_out):
    """Deterministic init, PyTorch-Linear-style uniform bounds. Returns W [in,out], b [1,out]."""
    kw, kb = jax.random.split(key)
    bound = 1.0 / math.sqrt(fan_in)
    w = jax.random.uniform(kw, (fan_in, fan_out), jnp.float32, -bound, bound)
    b = jax.random.uniform(kb, (1, fan_out), jnp.float32, -bound, bound)
    return w, b


def make_params(key, in_features, hidden_features, out_features):
    keys = jax.random.split(key, 4)
    we, be = _init_linear(keys[0], in_features, out_features)          # emb_convertor
    w0, b0 = _init_linear(keys[1], 8, hidden_features)                 # net[0]
    w1, b1 = _init_linear(keys[2], hidden_features, hidden_features)   # net[2]
    w2, b2 = _init_linear(keys[3], hidden_features, out_features)      # net[4]
    return dict(we=we, be=be, w0=w0, b0=b0, w1=w1, b1=b1, w2=w2, b2=b2)


def _reference(player_emb, actions, p):
    emb = player_emb @ p["we"] + p["be"]
    x = actions @ p["w0"] + p["b0"]
    x = _gelu_exact(x)
    x = x @ p["w1"] + p["b1"]
    x = _gelu_exact(x)
    act_emb = x @ p["w2"] + p["b2"]
    return emb @ act_emb.T


if __name__ == "__main__":
    key = jax.random.PRNGKey(0)

    # --- case 1: small shapes consistent with the module --------------------
    B, in_features, hidden_features, out_features, A = 8, 32, 32, 32, 8
    k_pe, k_act, k_par, k2 = jax.random.split(key, 4)
    player_emb = jax.random.normal(k_pe, (B, in_features), jnp.float32)
    actions = jax.random.uniform(k_act, (A, 8), jnp.float32, -1.0, 1.0)
    params = make_params(k_par, in_features, hidden_features, out_features)

    # TODO(synk): `flip` path (per-batch action mirroring with INVERT_SIDE_ACTIONS) and the
    # 3-D per-batch actions path are data-dependent glue; apply them to `actions` outside
    # the kernel if needed.

    out = jax.block_until_ready(controls_predictor_dot(player_emb, actions, params))
    ref = _reference(player_emb, actions, params)
    assert out.shape == (B, A)
    assert jnp.allclose(out, ref, atol=1e-4, rtol=1e-4), "case 1 mismatch vs reference"

    # --- case 2: exercise the B grid (padding, multi-step pipeline, transpose) ---
    B2, in2 = 300, 48
    k_pe2, k_act2, k_par2 = jax.random.split(k2, 3)
    player_emb2 = jax.random.normal(k_pe2, (B2, in2), jnp.float32)
    actions2 = jax.random.uniform(k_act2, (A, 8), jnp.float32, -1.0, 1.0)
    params2 = make_params(k_par2, in2, hidden_features, out_features)
    out2 = jax.block_until_ready(
        controls_predictor_dot(player_emb2, actions2, params2, tile_b=128))
    ref2 = _reference(player_emb2, actions2, params2)
    assert out2.shape == (B2, A)
    assert jnp.allclose(out2, ref2, atol=1e-4, rtol=1e-4), "case 2 mismatch vs reference"

    print("KERNEL_OK")
</pallas_src>

<mosaic_0001>
module attributes {stable_mosaic.version = 11 : i64} {
  func.func @action_mlp_kernel(%arg0: memref<8x8xf32, #tpu.memory_space<vmem>>, %arg1: memref<8x32xf32, #tpu.memory_space<vmem>>, %arg2: memref<1x32xf32, #tpu.memory_space<vmem>>, %arg3: memref<32x32xf32, #tpu.memory_space<vmem>>, %arg4: memref<1x32xf32, #tpu.memory_space<vmem>>, %arg5: memref<32x32xf32, #tpu.memory_space<vmem>>, %arg6: memref<1x32xf32, #tpu.memory_space<vmem>>, %arg7: memref<8x32xf32, #tpu.memory_space<vmem>>) attributes {dimension_semantics = [], scalar_prefetch = 0 : i64, scratch_operands = 0 : i64, tpu.core_type = #tpu.core_type<tc>} {
    %c0 = arith.constant 0 : index
    %c0_0 = arith.constant 0 : index
    %0 = vector.load %arg0[%c0, %c0_0] : memref<8x8xf32, #tpu.memory_space<vmem>>, vector<8x8xf32>
    %c0_1 = arith.constant 0 : index
    %c0_2 = arith.constant 0 : index
    %1 = vector.load %arg1[%c0_1, %c0_2] : memref<8x32xf32, #tpu.memory_space<vmem>>, vector<8x32xf32>
    %cst = arith.constant dense<0.000000e+00> : vector<8x32xf32>
    %2 = tpu.matmul %0, %1, %cst {dimension_numbers = #tpu.dot_dimension_numbers<[1], [0], [0], [1], [0, 0, 1, 1], [], []>} : vector<8x8xf32>, vector<8x32xf32>, vector<8x32xf32> -> vector<8x32xf32>
    %c0_3 = arith.constant 0 : index
    %c0_4 = arith.constant 0 : index
    %3 = vector.load %arg2[%c0_3, %c0_4] : memref<1x32xf32, #tpu.memory_space<vmem>>, vector<1x32xf32>
    %4 = vector.broadcast %3 : vector<1x32xf32> to vector<8x32xf32>
    %5 = arith.addf %2, %4 : vector<8x32xf32>
    %cst_5 = arith.constant 5.000000e-01 : f32
    %6 = vector.broadcast %cst_5 : f32 to vector<8x32xf32>
    %7 = arith.mulf %6, %5 : vector<8x32xf32>
    %cst_6 = arith.constant 0.707106769 : f32
    %8 = vector.broadcast %cst_6 : f32 to vector<8x32xf32>
    %9 = arith.mulf %5, %8 : vector<8x32xf32>
    %10 = math.erf %9 : vector<8x32xf32>
    %cst_7 = arith.constant 1.000000e+00 : f32
    %11 = vector.broadcast %cst_7 : f32 to vector<8x32xf32>
    %12 = arith.addf %11, %10 : vector<8x32xf32>
    %13 = arith.mulf %7, %12 : vector<8x32xf32>
    %c0_8 = arith.constant 0 : index
    %c0_9 = arith.constant 0 : index
    %14 = vector.load %arg3[%c0_8, %c0_9] : memref<32x32xf32, #tpu.memory_space<vmem>>, vector<32x32xf32>
    %cst_10 = arith.constant dense<0.000000e+00> : vector<8x32xf32>
    %15 = tpu.matmul %13, %14, %cst_10 {dimension_numbers = #tpu.dot_dimension_numbers<[1], [0], [0], [1], [0, 0, 1, 1], [], []>} : vector<8x32xf32>, vector<32x32xf32>, vector<8x32xf32> -> vector<8x32xf32>
    %c0_11 = arith.constant 0 : index
    %c0_12 = arith.constant 0 : index
    %16 = vector.load %arg4[%c0_11, %c0_12] : memref<1x32xf32, #tpu.memory_space<vmem>>, vector<1x32xf32>
    %17 = vector.broadcast %16 : vector<1x32xf32> to vector<8x32xf32>
    %18 = arith.addf %15, %17 : vector<8x32xf32>
    %cst_13 = arith.constant 5.000000e-01 : f32
    %19 = vector.broadcast %cst_13 : f32 to vector<8x32xf32>
    %20 = arith.mulf %19, %18 : vector<8x32xf32>
    %cst_14 = arith.constant 0.707106769 : f32
    %21 = vector.broadcast %cst_14 : f32 to vector<8x32xf32>
    %22 = arith.mulf %18, %21 : vector<8x32xf32>
    %23 = math.erf %22 : vector<8x32xf32>
    %cst_15 = arith.constant 1.000000e+00 : f32
    %24 = vector.broadcast %cst_15 : f32 to vector<8x32xf32>
    %25 = arith.addf %24, %23 : vector<8x32xf32>
    %26 = arith.mulf %20, %25 : vector<8x32xf32>
    %c0_16 = arith.constant 0 : index
    %c0_17 = arith.constant 0 : index
    %27 = vector.load %arg5[%c0_16, %c0_17] : memref<32x32xf32, #tpu.memory_space<vmem>>, vector<32x32xf32>
    %cst_18 = arith.constant dense<0.000000e+00> : vector<8x32xf32>
    %28 = tpu.matmul %26, %27, %cst_18 {dimension_numbers = #tpu.dot_dimension_numbers<[1], [0], [0], [1], [0, 0, 1, 1], [], []>} : vector<8x32xf32>, vector<32x32xf32>, vector<8x32xf32> -> vector<8x32xf32>
    %c0_19 = arith.constant 0 : index
    %c0_20 = arith.constant 0 : index
    %29 = vector.load %arg6[%c0_19, %c0_20] : memref<1x32xf32, #tpu.memory_space<vmem>>, vector<1x32xf32>
    %30 = vector.broadcast %29 : vector<1x32xf32> to vector<8x32xf32>
    %31 = arith.addf %28, %30 : vector<8x32xf32>
    %c0_21 = arith.constant 0 : index
    %c0_22 = arith.constant 0 : index
    %32 = vector.load %arg7[%c0_21, %c0_22] : memref<8x32xf32, #tpu.memory_space<vmem>>, vector<8x32xf32>
    tpu.vector_store %arg7[%c0_21, %c0_22], %31 {strides = array<i32>} : memref<8x32xf32, #tpu.memory_space<vmem>>, vector<8x32xf32>,
    return
  }
}

</mosaic_0001>

<llo_original>
// kernel: tpu_custom_call.1
$region0: #{tpu_custom_call.1}
  #allocation0 [shape = 'u32[]', space=smem, size = 0x4, offset = 0x4, fixed_abs, tag = 'smem constant byte address 0x4 - core index']
  #allocation1 [shape = 'u32[144,128]{1,0:T(1,128)}', space=vmem, size = 0x12000, scoped, tag = 'internal scratch']
  %s0 = inlined_call_operand.hbm [shape: f32[8,8], index: 0, kind: input, shape index: {}]
  %s1 = inlined_call_operand.hbm [shape: f32[8,32], index: 1, kind: input, shape index: {}]
  %s2 = inlined_call_operand.vmem [shape: f32[1,32], index: 2, kind: input, shape index: {}]
  %s3 = inlined_call_operand.hbm [shape: f32[32,32], index: 3, kind: input, shape index: {}]
  %s4 = inlined_call_operand.vmem [shape: f32[1,32], index: 4, kind: input, shape index: {}]
  %s5 = inlined_call_operand.hbm [shape: f32[32,32], index: 5, kind: input, shape index: {}]
  %s6 = inlined_call_operand.vmem [shape: f32[1,32], index: 6, kind: input, shape index: {}]
  %s7 = inlined_call_operand.hbm [shape: f32[8,32], index: 7, kind: output, shape index: {}]
  %s8 = sld [smem:[#allocation0]]
  $region54: #{tpu_custom_call.1} parent=0
    _
  %s10 = ssub.s32 1, %s8
  %s11 = scalar_select 0, %s10, %s8
  $region1: #{tpu_custom_call.1} parent=0
    #allocation2 [shape = 'u8[4096]{0}', space=vmem, size = 0x1000, scoped, tag = 'input window, operand 0, single buffered']
    #allocation3 [shape = 's32[1]{0}', space=sflag, size = 0x4, scoped, tag = 'scoped memory for tpu_custom_call.1']
    #allocation4 [shape = 's32[1]{0}', space=sflag, size = 0x4, scoped, tag = 'scoped memory for tpu_custom_call.1']
    #allocation5 [shape = 'u8[4096]{0}', space=vmem, size = 0x1000, scoped, tag = 'input window, operand 1, single buffered']
    #allocation6 [shape = 's32[1]{0}', space=sflag, size = 0x4, scoped, tag = 'scoped memory for tpu_custom_call.1']
    #allocation7 [shape = 'u8[16384]{0}', space=vmem, size = 0x4000, scoped, tag = 'input window, operand 3, single buffered']
    #allocation8 [shape = 'u8[16384]{0}', space=vmem, size = 0x4000, scoped, tag = 'input window, operand 5, single buffered']
    #allocation9 [shape = 's32[1]{0}', space=sflag, size = 0x4, scoped, tag = 'scoped memory for tpu_custom_call.1']
    #allocation10 [shape = 'u8[4096]{0}', space=vmem, size = 0x1000, scoped, tag = 'output window, operand 0, single buffered']
    %12 = vsyncpa [#allocation3], 0
    %13 = vsyncpa [#allocation6], 0
    %14 = vsyncpa [#allocation9], 0
    %15 = vsyncpa [#allocation4], 0
    // Predicated region
    $region2: #{tpu_custom_call.1} parent=1 // pred_check
      _
    $region3: #{tpu_custom_call.1} parent=1 // pred_check_branch
      %17 = sbr.rel (0) target = $region5
    $region4: #{tpu_custom_call.1} parent=1 // pred_region
      %s19 = ssub.s32 128, 128
      %20 = vsyncadd [#allocation3], %s19
      %s22 = sshll.u32 [#allocation2], 4
      %s23 = int_to_ptr.vmem [resolvable:$true] %s22
      %25 = dma.hbm_to_vmem [thread:$0]  %s0, 128, %s23, [#allocation3]
    $region5: #{tpu_custom_call.1} parent=1 // pred_fallthru
      _
    // Predicated region
    $region6: #{tpu_custom_call.1} parent=1 // pred_check
      _
    $region7: #{tpu_custom_call.1} parent=1 // pred_check_branch
      %27 = sbr.rel (0) target = $region9
    $region8: #{tpu_custom_call.1} parent=1 // pred_region
      %s29 = ssub.s32 128, 128
      %30 = vsyncadd [#allocation6], %s29
      %s32 = sshll.u32 [#allocation5], 4
      %s33 = int_to_ptr.vmem [resolvable:$true] %s32
      %35 = dma.hbm_to_vmem [thread:$0]  %s1, 128, %s33, [#allocation6]
    $region9: #{tpu_custom_call.1} parent=1 // pred_fallthru
      _
    // Predicated region
    $region10: #{tpu_custom_call.1} parent=1 // pred_check
      _
    $region11: #{tpu_custom_call.1} parent=1 // pred_check_branch
      %37 = sbr.rel (0) target = $region13
    $region12: #{tpu_custom_call.1} parent=1 // pred_region
      _
    $region13: #{tpu_custom_call.1} parent=1 // pred_fallthru
      _
    // Predicated region
    $region14: #{tpu_custom_call.1} parent=1 // pred_check
      _
    $region15: #{tpu_custom_call.1} parent=1 // pred_check_branch
      %39 = sbr.rel (0) target = $region17
    $region16: #{tpu_custom_call.1} parent=1 // pred_region
      %s41 = ssub.s32 512, 512
      %42 = vsyncadd [#allocation6], %s41
      %s43 = sshll.u32 [#allocation7], 4
      %s44 = int_to_ptr.vmem [resolvable:$true] %s43
      %49 = dma.hbm_to_vmem [thread:$0]  %s3, 512, %s44, [#allocation6], 128, 128, 8
    $region17: #{tpu_custom_call.1} parent=1 // pred_fallthru
      _
    // Predicated region
    $region18: #{tpu_custom_call.1} parent=1 // pred_check
      _
    $region19: #{tpu_custom_call.1} parent=1 // pred_check_branch
      %51 = sbr.rel (0) target = $region21
    $region20: #{tpu_custom_call.1} parent=1 // pred_region
      _
    $region21: #{tpu_custom_call.1} parent=1 // pred_fallthru
      _
    // Predicated region
    $region22: #{tpu_custom_call.1} parent=1 // pred_check
      _
    $region23: #{tpu_custom_call.1} parent=1 // pred_check_branch
      %53 = sbr.rel (0) target = $region25
    $region24: #{tpu_custom_call.1} parent=1 // pred_region
      %s55 = ssub.s32 512, 512
      %56 = vsyncadd [#allocation9], %s55
      %s57 = sshll.u32 [#allocation8], 4
      %s58 = int_to_ptr.vmem [resolvable:$true] %s57
      %63 = dma.hbm_to_vmem [thread:$0]  %s5, 512, %s58, [#allocation9], 128, 128, 8
    $region25: #{tpu_custom_call.1} parent=1 // pred_fallthru
      _
    // Predicated region
    $region26: #{tpu_custom_call.1} parent=1 // pred_check
      _
    $region27: #{tpu_custom_call.1} parent=1 // pred_check_branch
      %65 = sbr.rel (0) target = $region29
    $region28: #{tpu_custom_call.1} parent=1 // pred_region
      _
    $region29: #{tpu_custom_call.1} parent=1 // pred_fallthru
      _
    // Predicated region
    $region30: #{tpu_custom_call.1} parent=1 // pred_check
      _
    $region31: #{tpu_custom_call.1} parent=1 // pred_check_branch
      %67 = sbr.rel (0) target = $region33
    $region32: #{tpu_custom_call.1} parent=1 // pred_region
      %68 = dma.done [#allocation3], 128
    $region33: #{tpu_custom_call.1} parent=1 // pred_fallthru
      _
    // Predicated region
    $region34: #{tpu_custom_call.1} parent=1 // pred_check
      _
    $region35: #{tpu_custom_call.1} parent=1 // pred_check_branch
      %70 = sbr.rel (0) target = $region37
    $region36: #{tpu_custom_call.1} parent=1 // pred_region
      %71 = dma.done [#allocation6], 128
    $region37: #{tpu_custom_call.1} parent=1 // pred_fallthru
      _
    // Predicated region
    $region38: #{tpu_custom_call.1} parent=1 // pred_check
      _
    $region39: #{tpu_custom_call.1} parent=1 // pred_check_branch
      %73 = sbr.rel (0) target = $region41
    $region40: #{tpu_custom_call.1} parent=1 // pred_region
      %74 = dma.done [#allocation6], 512
    $region41: #{tpu_custom_call.1} parent=1 // pred_fallthru
      _
    // Predicated region
    $region42: #{tpu_custom_call.1} parent=1 // pred_check
      _
    $region43: #{tpu_custom_call.1} parent=1 // pred_check_branch
      %76 = sbr.rel (0) target = $region45
    $region44: #{tpu_custom_call.1} parent=1 // pred_region
      %77 = dma.done [#allocation9], 512
    $region45: #{tpu_custom_call.1} parent=1 // pred_fallthru
      _
    %v78 = vld [vmem:[#allocation2] sm:$0xff]
    %v79 = vld [vmem:[#allocation5] sm:$0xff]
    %v80 = vld [vmem:[%s2] sm:$0x1]
    %v82 = vlaneseq
    %v83 = vshrl.u32 %v82, 7
    %v84 = vsub.s32 0, %v83
    %v85 = vrot.slane %v80, %v84
    %vm87 = vcmask 64512
    %v89 = vsel %vm87, %v78, 0
    %91 = vmatprep.subr.mxu0 0.0
    %92 = vmatpush1.msra.mxu0 %v79
    %93 = vmatprep.subr.mxu0 0.0
    %94 = vmatpush1.msra.mxu0 0.0
    %95 = vmatprep.subr.mxu0 0.0
    %96 = vmatpush1.msra.mxu0 0.0
    %97 = vmatprep.subr.mxu0 0.0
    %98 = vmatpush1.msra.mxu0 0.0
    %99 = vmatprep.subr.mxu0 0.0
    %100 = vmatpush1.msra.mxu0 0.0
    %101 = vmatprep.subr.mxu0 0.0
    %102 = vmatpush1.msra.mxu0 0.0
    %103 = vmatprep.subr.mxu0 0.0
    %104 = vmatpush1.msra.mxu0 0.0
    %105 = vmatprep.subr.mxu0 0.0
    %106 = vmatpush1.msra.mxu0 0.0
    %107 = vmatprep.subr.mxu0 0.0
    %108 = vmatpush1.msra.mxu0 0.0
    %109 = vmatprep.subr.mxu0 0.0
    %110 = vmatpush1.msra.mxu0 0.0
    %111 = vmatprep.subr.mxu0 0.0
    %112 = vmatpush1.msra.mxu0 0.0
    %113 = vmatprep.subr.mxu0 0.0
    %114 = vmatpush1.msra.mxu0 0.0
    %115 = vmatprep.subr.mxu0 0.0
    %116 = vmatpush1.msra.mxu0 0.0
    %117 = vmatprep.subr.mxu0 0.0
    %118 = vmatpush1.msra.mxu0 0.0
    %119 = vmatprep.subr.mxu0 0.0
    %120 = vmatpush1.msra.mxu0 0.0
    %121 = vmatprep.subr.mxu0 0.0
    %122 = vmatpush1.msra.mxu0 0.0
    %123 = vmatprep.subr.mxu0 0.0
    %124 = vmatpush1.msra.mxu0 0.0
    %125 = vmatprep.subr.mxu0 0.0
    %126 = vmatpush1.msra.mxu0 0.0
    %127 = vmatprep.subr.mxu0 0.0
    %128 = vmatpush1.msra.mxu0 0.0
    %129 = vmatprep.subr.mxu0 0.0
    %130 = vmatpush1.msra.mxu0 0.0
    %131 = vmatprep.subr.mxu0 0.0
    %132 = vmatpush1.msra.mxu0 0.0
    %133 = vmatprep.subr.mxu0 0.0
    %134 = vmatpush1.msra.mxu0 0.0
    %135 = vmatprep.subr.mxu0 0.0
    %136 = vmatpush1.msra.mxu0 0.0
    %137 = vmatprep.subr.mxu0 0.0
    %138 = vmatpush1.msra.mxu0 0.0
    %139 = vmatprep.subr.mxu0 0.0
    %140 = vmatpush1.msra.mxu0 0.0
    %141 = vmatprep.subr.mxu0 0.0
    %142 = vmatpush1.msra.mxu0 0.0
    %143 = vmatprep.subr.mxu0 0.0
    %144 = vmatpush1.msra.mxu0 0.0
    %145 = vmatprep.subr.mxu0 0.0
    %146 = vmatpush1.msra.mxu0 0.0
    %147 = vmatprep.subr.mxu0 0.0
    %148 = vmatpush1.msra.mxu0 0.0
    %149 = vmatprep.subr.mxu0 0.0
    %150 = vmatpush1.msra.mxu0 0.0
    %151 = vmatprep.subr.mxu0 0.0
    %152 = vmatpush1.msra.mxu0 0.0
    %153 = vmatprep.subr.mxu0 0.0
    %154 = vmatpush1.msra.mxu0 0.0
    %155 = vmatprep.mubr.f32.mxu0 0.0
    %156 = vmatmul.mubr.f32.gmra.mrb[0].mxu0 %v89
    %v157 = vpop.f32.mrb[0].mxu0
    %v158 = vadd.f32 %v85, %v157
    %v159 = vpop.f32.mrb[0].mxu0
    %160 = vdwg.mxu0
    %v161 = vmul.f32 %v158, 0.5
    %v162 = vmul.f32 %v158, 0.70710677
    %v163 = verf.f32.pop %v162
    %v164 = vadd.f32 %v163, 1.0
    %v165 = vmul.f32 %v161, %v164
    %v166 = vld [vmem:[#allocation7] sm:$0xff]
    %v167 = vld [vmem:[#allocation7 + $0x8] sm:$0xff]
    %v168 = vld [vmem:[#allocation7 + $0x10] sm:$0xff]
    %v169 = vld [vmem:[#allocation7 + $0x18] sm:$0xff]
    %v170 = vld [vmem:[%s4] sm:$0x1]
    %v172 = vlaneseq
    %v173 = vshrl.u32 %v172, 7
    %v174 = vsub.s32 0, %v173
    %v175 = vrot.slane %v170, %v174
    %vm177 = vcmask 261120
    %v179 = vsel %vm177, %v165, 0
    %181 = vmatprep.subr.mxu0 0.0
    %182 = vmatpush1.msra.mxu0 %v166
    %183 = vmatprep.subr.mxu0 0.0
    %184 = vmatpush1.msra.mxu0 %v167
    %185 = vmatprep.subr.mxu0 0.0
    %186 = vmatpush1.msra.mxu0 %v168
    %187 = vmatprep.subr.mxu0 0.0
    %188 = vmatpush1.msra.mxu0 %v169
    %189 = vmatprep.subr.mxu0 0.0
    %190 = vmatpush1.msra.mxu0 0.0
    %191 = vmatprep.subr.mxu0 0.0
    %192 = vmatpush1.msra.mxu0 0.0
    %193 = vmatprep.subr.mxu0 0.0
    %194 = vmatpush1.msra.mxu0 0.0
    %195 = vmatprep.subr.mxu0 0.0
    %196 = vmatpush1.msra.mxu0 0.0
    %197 = vmatprep.subr.mxu0 0.0
    %198 = vmatpush1.msra.mxu0 0.0
    %199 = vmatprep.subr.mxu0 0.0
    %200 = vmatpush1.msra.mxu0 0.0
    %201 = vmatprep.subr.mxu0 0.0
    %202 = vmatpush1.msra.mxu0 0.0
    %203 = vmatprep.subr.mxu0 0.0
    %204 = vmatpush1.msra.mxu0 0.0
    %205 = vmatprep.subr.mxu0 0.0
    %206 = vmatpush1.msra.mxu0 0.0
    %207 = vmatprep.subr.mxu0 0.0
    %208 = vmatpush1.msra.mxu0 0.0
    %209 = vmatprep.subr.mxu0 0.0
    %210 = vmatpush1.msra.mxu0 0.0
    %211 = vmatprep.subr.mxu0 0.0
    %212 = vmatpush1.msra.mxu0 0.0
    %213 = vmatprep.subr.mxu0 0.0
    %214 = vmatpush1.msra.mxu0 0.0
    %215 = vmatprep.subr.mxu0 0.0
    %216 = vmatpush1.msra.mxu0 0.0
    %217 = vmatprep.subr.mxu0 0.0
    %218 = vmatpush1.msra.mxu0 0.0
    %219 = vmatprep.subr.mxu0 0.0
    %220 = vmatpush1.msra.mxu0 0.0
    %221 = vmatprep.subr.mxu0 0.0
    %222 = vmatpush1.msra.mxu0 0.0
    %223 = vmatprep.subr.mxu0 0.0
    %224 = vmatpush1.msra.mxu0 0.0
    %225 = vmatprep.subr.mxu0 0.0
    %226 = vmatpush1.msra.mxu0 0.0
    %227 = vmatprep.subr.mxu0 0.0
    %228 = vmatpush1.msra.mxu0 0.0
    %229 = vmatprep.subr.mxu0 0.0
    %230 = vmatpush1.msra.mxu0 0.0
    %231 = vmatprep.subr.mxu0 0.0
    %232 = vmatpush1.msra.mxu0 0.0
    %233 = vmatprep.subr.mxu0 0.0
    %234 = vmatpush1.msra.mxu0 0.0
    %235 = vmatprep.subr.mxu0 0.0
    %236 = vmatpush1.msra.mxu0 0.0
    %237 = vmatprep.subr.mxu0 0.0
    %238 = vmatpush1.msra.mxu0 0.0
    %239 = vmatprep.subr.mxu0 0.0
    %240 = vmatpush1.msra.mxu0 0.0
    %241 = vmatprep.subr.mxu0 0.0
    %242 = vmatpush1.msra.mxu0 0.0
    %243 = vmatprep.subr.mxu0 0.0
    %244 = vmatpush1.msra.mxu0 0.0
    %245 = vmatprep.mubr.f32.mxu0 0.0
    %246 = vmatmul.mubr.f32.gmra.mrb[0].mxu0 %v179
    %v247 = vpop.f32.mrb[0].mxu0
    %v248 = vadd.f32 %v175, %v247
    %v249 = vpop.f32.mrb[0].mxu0
    %250 = vdwg.mxu0
    %v251 = vmul.f32 %v248, 0.5
    %v252 = vmul.f32 %v248, 0.70710677
    %v253 = verf.f32.pop %v252
    %v254 = vadd.f32 %v253, 1.0
    %v255 = vmul.f32 %v251, %v254
    %v256 = vld [vmem:[#allocation8] sm:$0xff]
    %v257 = vld [vmem:[#allocation8 + $0x8] sm:$0xff]
    %v258 = vld [vmem:[#allocation8 + $0x10] sm:$0xff]
    %v259 = vld [vmem:[#allocation8 + $0x18] sm:$0xff]
    %v260 = vld [vmem:[%s6] sm:$0x1]
    %v262 = vlaneseq
    %v263 = vshrl.u32 %v262, 7
    %v264 = vsub.s32 0, %v263
    %v265 = vrot.slane %v260, %v264
    %v268 = vsel %vm177, %v255, 0
    %270 = vmatprep.subr.mxu0 0.0
    %271 = vmatpush1.msra.mxu0 %v256
    %272 = vmatprep.subr.mxu0 0.0
    %273 = vmatpush1.msra.mxu0 %v257
    %274 = vmatprep.subr.mxu0 0.0
    %275 = vmatpush1.msra.mxu0 %v258
    %276 = vmatprep.subr.mxu0 0.0
    %277 = vmatpush1.msra.mxu0 %v259
    %278 = vmatprep.subr.mxu0 0.0
    %279 = vmatpush1.msra.mxu0 0.0
    %280 = vmatprep.subr.mxu0 0.0
    %281 = vmatpush1.msra.mxu0 0.0
    %282 = vmatprep.subr.mxu0 0.0
    %283 = vmatpush1.msra.mxu0 0.0
    %284 = vmatprep.subr.mxu0 0.0
    %285 = vmatpush1.msra.mxu0 0.0
    %286 = vmatprep.subr.mxu0 0.0
    %287 = vmatpush1.msra.mxu0 0.0
    %288 = vmatprep.subr.mxu0 0.0
    %289 = vmatpush1.msra.mxu0 0.0
    %290 = vmatprep.subr.mxu0 0.0
    %291 = vmatpush1.msra.mxu0 0.0
    %292 = vmatprep.subr.mxu0 0.0
    %293 = vmatpush1.msra.mxu0 0.0
    %294 = vmatprep.subr.mxu0 0.0
    %295 = vmatpush1.msra.mxu0 0.0
    %296 = vmatprep.subr.mxu0 0.0
    %297 = vmatpush1.msra.mxu0 0.0
    %298 = vmatprep.subr.mxu0 0.0
    %299 = vmatpush1.msra.mxu0 0.0
    %300 = vmatprep.subr.mxu0 0.0
    %301 = vmatpush1.msra.mxu0 0.0
    %302 = vmatprep.subr.mxu0 0.0
    %303 = vmatpush1.msra.mxu0 0.0
    %304 = vmatprep.subr.mxu0 0.0
    %305 = vmatpush1.msra.mxu0 0.0
    %306 = vmatprep.subr.mxu0 0.0
    %307 = vmatpush1.msra.mxu0 0.0
    %308 = vmatprep.subr.mxu0 0.0
    %309 = vmatpush1.msra.mxu0 0.0
    %310 = vmatprep.subr.mxu0 0.0
    %311 = vmatpush1.msra.mxu0 0.0
    %312 = vmatprep.subr.mxu0 0.0
    %313 = vmatpush1.msra.mxu0 0.0
    %314 = vmatprep.subr.mxu0 0.0
    %315 = vmatpush1.msra.mxu0 0.0
    %316 = vmatprep.subr.mxu0 0.0
    %317 = vmatpush1.msra.mxu0 0.0
    %318 = vmatprep.subr.mxu0 0.0
    %319 = vmatpush1.msra.mxu0 0.0
    %320 = vmatprep.subr.mxu0 0.0
    %321 = vmatpush1.msra.mxu0 0.0
    %322 = vmatprep.subr.mxu0 0.0
    %323 = vmatpush1.msra.mxu0 0.0
    %324 = vmatprep.subr.mxu0 0.0
    %325 = vmatpush1.msra.mxu0 0.0
    %326 = vmatprep.subr.mxu0 0.0
    %327 = vmatpush1.msra.mxu0 0.0
    %328 = vmatprep.subr.mxu0 0.0
    %329 = vmatpush1.msra.mxu0 0.0
    %330 = vmatprep.subr.mxu0 0.0
    %331 = vmatpush1.msra.mxu0 0.0
    %332 = vmatprep.subr.mxu0 0.0
    %333 = vmatpush1.msra.mxu0 0.0
    %334 = vmatprep.mubr.f32.mxu0 0.0
    %335 = vmatmul.mubr.f32.gmra.mrb[0].mxu0 %v268
    %v336 = vpop.f32.mrb[0].mxu0
    %v337 = vadd.f32 %v265, %v336
    %v338 = vpop.f32.mrb[0].mxu0
    %339 = vdwg.mxu0
    %340 = vst.msk [vmem:[#allocation10] sm:$0xff] %vm177, %v337
    // Predicated region
    $region46: #{tpu_custom_call.1} parent=1 // pred_check
      _
    $region47: #{tpu_custom_call.1} parent=1 // pred_check_branch
      %342 = sbr.rel (0) target = $region49
    $region48: #{tpu_custom_call.1} parent=1 // pred_region
      %s344 = ssub.s32 128, 128
      %345 = vsyncadd [#allocation4], %s344
      %s347 = sshll.u32 [#allocation10], 4
      %s348 = int_to_ptr.vmem [resolvable:$true] %s347
      %350 = dma.vmem_to_hbm [thread:$0]  %s348, 128, %s7, [#allocation4]
    $region49: #{tpu_custom_call.1} parent=1 // pred_fallthru
      _
    // Predicated region
    $region50: #{tpu_custom_call.1} parent=1 // pred_check
      _
    $region51: #{tpu_custom_call.1} parent=1 // pred_check_branch
      %352 = sbr.rel (0) target = $region53
    $region52: #{tpu_custom_call.1} parent=1 // pred_region
      %353 = dma.done [#allocation4], 128
    $region53: #{tpu_custom_call.1} parent=1 // pred_fallthru
      _
    %354 = vsyncpa [#allocation3], 1
    %355 = vsyncpa [#allocation6], 1
    %356 = vsyncpa [#allocation9], 1
    %357 = vsyncpa [#allocation4], 1

</llo_original>
